<compile_context>
chip_gen: v5e
topology: v5e:2x2
jax: 0.10.0
libtpu: 0.0.40
codegen_flags: <defaults>
</compile_context>

<pallas_src>
import functools
import math

import jax
import jax.numpy as jnp
from jax import lax
from jax.experimental import pallas as pl
from jax.experimental.pallas import tpu as pltpu


def _round_up(x, n):
    return ((x + n - 1) // n) * n


# ---------------------------------------------------------------------------
# Kernel
# ---------------------------------------------------------------------------

def _uniform24(shape, row_off, col_off, n_total, seed_u32):
    """Counter-based uniform ints in [0, 2^24), keyed on the global element index
    so the dropout mask is independent of tiling.  Pure integer VPU ops (murmur-style
    finalizer) -- no TPU-only PRNG primitives, so it also runs in interpret mode."""
    row = lax.broadcasted_iota(jnp.int32, shape, 0) + row_off
    col = lax.broadcasted_iota(jnp.int32, shape, 1) + col_off
    idx = (row * jnp.int32(n_total) + col).astype(jnp.uint32)
    h = idx ^ (seed_u32 * jnp.uint32(0x9E3779B9))
    h = h ^ (h >> 16)
    h = h * jnp.uint32(0x7FEB352D)
    h = h ^ (h >> 15)
    h = h * jnp.uint32(0x846CA68B)
    h = h ^ (h >> 16)
    return (h >> 8).astype(jnp.int32)          # 24 uniform bits, safely positive int32


def _linear_dropout_kernel(seed_ref, x_ref, w_ref, b_ref, o_ref, *,
                           dropout_p: float, training: bool, n_total: int):
    # x_ref: (TILE_M, S)  f32   -- streamed f32, cast to bf16 on-chip
    # w_ref: (S, TILE_N)  bf16  -- pre-transposed (plain NN matmul, no in-kernel vxpose)
    # b_ref: (1, TILE_N)  f32
    # o_ref: (TILE_M, TILE_N)   out dtype
    x = x_ref[...].astype(jnp.bfloat16)
    y = jnp.dot(x, w_ref[...], preferred_element_type=jnp.float32)
    y = y + b_ref[...]

    if training and dropout_p > 0.0:
        tm, tn = o_ref.shape
        u24 = _uniform24(y.shape,
                         pl.program_id(0) * tm,
                         pl.program_id(1) * tn,
                         n_total,
                         seed_ref[0].astype(jnp.uint32))
        # keep iff u >= p * 2^24  (inverted dropout)
        threshold = jnp.int32(min(int(dropout_p * (1 << 24)), 1 << 24))
        scale = jnp.float32(1.0 / (1.0 - dropout_p))     # precomputed, single vmul
        y = jnp.where(u24 >= threshold, y * scale, jnp.zeros_like(y))

    o_ref[...] = y.astype(o_ref.dtype)


# ---------------------------------------------------------------------------
# Tiling / VMEM sizing
# ---------------------------------------------------------------------------

def _vmem_budget_bytes():
    # Generation-aware: ~75% of physical VMEM (128 MiB v5e/v6e, 64 MiB/core v7x),
    # conservative fallback when no TPU is attached (e.g. interpret mode).
    try:
        cap = int(pltpu.get_tpu_info().vmem_capacity_bytes)
    except Exception:
        cap = 64 * 1024 * 1024
    return max(16 * 1024 * 1024, min(int(cap * 0.75), 96 * 1024 * 1024))


def _choose_tiles(m, seq_len, d_out, out_bytes, budget):
    # Weight tile (double-buffered bf16): full width when it fits half the budget,
    # otherwise the largest multiple of 128 that does (only when d_out is 128-aligned,
    # since a partial-width block must be a multiple of 128).
    def w_cost(tn):
        return 2 * seq_len * tn * 2

    tile_n = d_out
    if d_out % 128 == 0 and w_cost(tile_n) > budget // 2:
        tile_n = ((budget // 2) // (2 * seq_len * 2)) // 128 * 128
        tile_n = int(max(128, min(tile_n, d_out)))

    # Row tile from what is left: double-buffered f32 x-tile + out-tile per row.
    left = budget - w_cost(tile_n) - 2 * tile_n * 4
    per_row = 2 * seq_len * 4 + 2 * tile_n * out_bytes
    tile_m = max(8, min(2048, left // max(per_row, 1)))
    tile_m = int((tile_m // 8) * 8)
    if m <= tile_m:
        tile_m = m                      # full-extent block is always legal
    return tile_m, tile_n


# ---------------------------------------------------------------------------
# Parameter prep (do ONCE at init, not per forward call)
# ---------------------------------------------------------------------------

def prepare_params(weight, bias):
    """weight: (d_emb, seq_len) torch nn.Linear layout; bias: (d_emb,).
    Returns (w_prepared (seq_len, d_out) bf16, b_prepared (1, d_out) f32, d_emb)."""
    d_emb, seq_len = weight.shape
    d_pad = _round_up(d_emb, 128)
    # Lane-dense padding only when the overhead is small; for narrow / awkward d_emb
    # (e.g. 32) the unpadded full-extent output writes far fewer HBM bytes.
    if d_pad != d_emb and (d_emb < 128 or d_pad > d_emb * 5 // 4):
        d_pad = d_emb
    w = weight.astype(jnp.bfloat16)
    b = bias.astype(jnp.float32).reshape(1, d_emb)
    if d_pad != d_emb:
        w = jnp.pad(w, ((0, d_pad - d_emb), (0, 0)))
        b = jnp.pad(b, ((0, 0), (0, d_pad - d_emb)))
    w_t = jnp.asarray(w.T)              # (seq_len, d_out), MXU-friendly NN layout
    return w_t, b, d_emb


# ---------------------------------------------------------------------------
# Forward
# ---------------------------------------------------------------------------

def sequence_linear_embedding(x, prepared_params, *, dropout_p=0.0,
                              training=False, seed=0, out_dtype=jnp.float32):
    """JAX/Pallas equivalent of SequenceLinearEmbedding.forward.

    x: (..., seq_len) -> (..., d_emb) in `out_dtype` (f32 default, like torch).
    """
    w, b, d_emb = prepared_params
    seq_len, d_out = w.shape
    assert x.shape[-1] == seq_len, "last dim of x must equal seq_len"
    lead = x.shape[:-1]
    m = int(math.prod(lead)) if lead else 1

    x2d = x.reshape(m, seq_len).astype(jnp.float32)   # bf16 cast happens in-kernel
    seed_arr = jnp.asarray(seed, dtype=jnp.int32).reshape(1)

    out_bytes = jnp.dtype(out_dtype).itemsize
    budget = _vmem_budget_bytes()
    tile_m, tile_n = _choose_tiles(m, seq_len, d_out, out_bytes, budget)
    grid = (pl.cdiv(m, tile_m), pl.cdiv(d_out, tile_n))

    # VMEM limit from the actual double-buffered working set (+ headroom).
    vmem_bytes = (2 * tile_m * seq_len * 4            # x tiles (f32)
                  + 2 * seq_len * tile_n * 2          # weight tiles (bf16)
                  + 2 * tile_n * 4                    # bias tiles
                  + 2 * tile_m * tile_n * out_bytes   # output tiles
                  + 4 * 1024 * 1024)                  # Mosaic scratch headroom
    vmem_limit = int(min(max(vmem_bytes, 16 * 1024 * 1024), 120 * 1024 * 1024))

    kernel = functools.partial(_linear_dropout_kernel,
                               dropout_p=float(dropout_p),
                               training=bool(training),
                               n_total=int(d_out))

    cost = pl.CostEstimate(
        flops=2 * m * seq_len * d_out,
        transcendentals=0,
        bytes_accessed=(m * seq_len * 4 + seq_len * d_out * 2 + d_out * 4
                        + m * d_out * out_bytes))

    out2d = pl.pallas_call(
        kernel,
        out_shape=jax.ShapeDtypeStruct((m, d_out), out_dtype),
        grid_spec=pltpu.PrefetchScalarGridSpec(
            num_scalar_prefetch=1,                    # seed lands in SMEM
            grid=grid,
            in_specs=[
                pl.BlockSpec((tile_m, seq_len), lambda i, j, _s: (i, 0)),
                pl.BlockSpec((seq_len, tile_n), lambda i, j, _s: (0, j)),
                pl.BlockSpec((1, tile_n), lambda i, j, _s: (0, j)),
            ],
            out_specs=pl.BlockSpec((tile_m, tile_n), lambda i, j, _s: (i, j)),
        ),
        compiler_params=pltpu.CompilerParams(
            dimension_semantics=("parallel", "parallel"),  # shard across TCs
            vmem_limit_bytes=vmem_limit),
        cost_estimate=cost,
    )(seed_arr, x2d, w, b)

    if d_out != d_emb:
        out2d = out2d[:, :d_emb]
    return out2d.reshape(*lead, d_emb)


def init_params(key, seq_len, d_emb):
    """kaiming_normal_ weight (fan_in=seq_len, gain=sqrt(2)), zero bias (torch layout)."""
    std = math.sqrt(2.0 / seq_len)
    weight = jax.random.normal(key, (d_emb, seq_len), dtype=jnp.float32) * std
    bias = jnp.zeros((d_emb,), dtype=jnp.float32)
    return weight, bias


if __name__ == "__main__":
    batch, channels, seq_len, d_emb = 2, 4, 8, 32
    dropout_p = 0.1  # module hyperparameter

    key = jax.random.PRNGKey(0)
    k_x, k_w = jax.random.split(key)

    x = jax.random.normal(k_x, (batch, channels, seq_len), dtype=jnp.float32)
    weight, bias = init_params(k_w, seq_len, d_emb)

    params = prepare_params(weight, bias)          # one-time param prep

    # eval-mode forward (dropout is identity at inference, like nn.Dropout.eval())
    out = sequence_linear_embedding(x, params, dropout_p=dropout_p, training=False)
    out = jax.block_until_ready(out)

    # reference with the same bf16 MXU inputs / f32 accumulation
    w_prep, b_prep, _ = params
    ref = (jnp.dot(x.reshape(-1, seq_len).astype(jnp.bfloat16), w_prep,
                   preferred_element_type=jnp.float32)
           + b_prep).reshape(batch, channels, d_emb)
    assert out.shape == (batch, channels, d_emb)
    assert jnp.allclose(out, ref, atol=1e-3, rtol=1e-3), "mismatch vs reference"

    # training-mode smoke test: every element is either dropped (exactly 0) or
    # equals the eval value scaled by 1/(1-p).
    out_tr = sequence_linear_embedding(x, params, dropout_p=dropout_p,
                                       training=True, seed=123)
    out_tr = jax.block_until_ready(out_tr)
    scale = 1.0 / (1.0 - dropout_p)
    dropped = jnp.isclose(out_tr, 0.0, atol=1e-6)
    kept = jnp.isclose(out_tr, out * scale, atol=1e-4, rtol=1e-3)
    assert bool(jnp.all(dropped | kept)), "dropout output inconsistent"

    print("KERNEL_OK")
</pallas_src>

<mosaic_0001>
module attributes {stable_mosaic.version = 11 : i64} {
  func.func @_linear_dropout_kernel(%arg0: i32, %arg1: i32, %arg2: memref<1xi32, #tpu.memory_space<smem>>, %arg3: memref<8x8xf32, #tpu.memory_space<vmem>>, %arg4: memref<8x32xbf16, #tpu.memory_space<vmem>>, %arg5: memref<1x32xf32, #tpu.memory_space<vmem>>, %arg6: memref<8x32xf32, #tpu.memory_space<vmem>>) attributes {dimension_semantics = [#tpu.dimension_semantics<parallel>, #tpu.dimension_semantics<parallel>], iteration_bounds = array<i64: 1, 1>, scalar_prefetch = 1 : i64, scratch_operands = 0 : i64, tpu.core_type = #tpu.core_type<tc>, window_params = [{transform_indices = @transform_0, window_bounds = array<i64: 8, 8>}, {transform_indices = @transform_1, window_bounds = array<i64: 8, 32>}, {transform_indices = @transform_2, window_bounds = array<i64: 1, 32>}, {transform_indices = @transform_3, window_bounds = array<i64: 8, 32>}]} {
    %c0 = arith.constant 0 : index
    %c0_0 = arith.constant 0 : index
    %0 = vector.load %arg3[%c0, %c0_0] : memref<8x8xf32, #tpu.memory_space<vmem>>, vector<8x8xf32>
    %1 = arith.truncf %0 : vector<8x8xf32> to vector<8x8xbf16>
    %c0_1 = arith.constant 0 : index
    %c0_2 = arith.constant 0 : index
    %2 = vector.load %arg4[%c0_1, %c0_2] : memref<8x32xbf16, #tpu.memory_space<vmem>>, vector<8x32xbf16>
    %cst = arith.constant dense<0.000000e+00> : vector<8x32xf32>
    %3 = tpu.matmul %1, %2, %cst {dimension_numbers = #tpu.dot_dimension_numbers<[1], [0], [0], [1], [0, 0, 1, 1], [], []>} : vector<8x8xbf16>, vector<8x32xbf16>, vector<8x32xf32> -> vector<8x32xf32>
    %c0_3 = arith.constant 0 : index
    %c0_4 = arith.constant 0 : index
    %4 = vector.load %arg5[%c0_3, %c0_4] : memref<1x32xf32, #tpu.memory_space<vmem>>, vector<1x32xf32>
    %5 = vector.broadcast %4 : vector<1x32xf32> to vector<8x32xf32>
    %6 = arith.addf %3, %5 : vector<8x32xf32>
    %c0_5 = arith.constant 0 : index
    %c0_6 = arith.constant 0 : index
    %7 = vector.load %arg6[%c0_5, %c0_6] : memref<8x32xf32, #tpu.memory_space<vmem>>, vector<8x32xf32>
    tpu.vector_store %arg6[%c0_5, %c0_6], %6 {strides = array<i32>} : memref<8x32xf32, #tpu.memory_space<vmem>>, vector<8x32xf32>,
    return
  }
  func.func @transform_0(%arg0: i32, %arg1: i32, %arg2: memref<1xi32, #tpu.memory_space<smem>>) -> (i32, i32) {
    %c0_i32 = arith.constant 0 : i32
    %c0_i32_0 = arith.constant 0 : i32
    return %arg0, %c0_i32 : i32, i32
  }
  func.func @transform_1(%arg0: i32, %arg1: i32, %arg2: memref<1xi32, #tpu.memory_space<smem>>) -> (i32, i32) {
    %c0_i32 = arith.constant 0 : i32
    %c0_i32_0 = arith.constant 0 : i32
    return %c0_i32, %arg1 : i32, i32
  }
  func.func @transform_2(%arg0: i32, %arg1: i32, %arg2: memref<1xi32, #tpu.memory_space<smem>>) -> (i32, i32) {
    %c0_i32 = arith.constant 0 : i32
    %c0_i32_0 = arith.constant 0 : i32
    return %c0_i32, %arg1 : i32, i32
  }
  func.func @transform_3(%arg0: i32, %arg1: i32, %arg2: memref<1xi32, #tpu.memory_space<smem>>) -> (i32, i32) {
    %c0_i32 = arith.constant 0 : i32
    return %arg0, %arg1 : i32, i32
  }
}

</mosaic_0001>

<llo_original>
// kernel: tpu_custom_call.1
$region0: #{tpu_custom_call.1}
  #allocation0 [shape = 'u32[]', space=smem, size = 0x4, offset = 0x4, fixed_abs, tag = 'smem constant byte address 0x4 - core index']
  #allocation1 [shape = 'u32[72,128]{1,0:T(1,128)}', space=vmem, size = 0x9000, scoped, tag = 'internal scratch']
  #allocation2 [shape = 's32[1]{0}', space=sflag, size = 0x4, scoped, tag = 'scoped memory for tpu_custom_call.1']
  #allocation3 [shape = 's32[1]{0:T(128)S(6)}', space=smem, size = 0x200, scoped, tag = 'prefetched SMEM operand 0']
  %s0 = inlined_call_operand.<no memory space> [shape: s32[1], index: 0, kind: input, shape index: {}]
  %s1 = inlined_call_operand.hbm [shape: f32[8,8], index: 1, kind: input, shape index: {}]
  %s2 = inlined_call_operand.hbm [shape: bf16[8,32], index: 2, kind: input, shape index: {}]
  %s3 = inlined_call_operand.vmem [shape: f32[1,32], index: 3, kind: input, shape index: {}]
  %s4 = inlined_call_operand.hbm [shape: f32[8,32], index: 4, kind: output, shape index: {}]
  %s5 = sld [smem:[#allocation0]]
  $region30: #{tpu_custom_call.1} parent=0
    _
  %s7 = ssub.s32 1, %s5
  %s8 = scalar_select 0, %s7, %s5
  %9 = sst [smem:[#allocation3]] %s0
  $region1: #{tpu_custom_call.1} parent=0
    #allocation4 [shape = 'u8[4096]{0}', space=vmem, size = 0x1000, scoped, tag = 'input window, operand 1, single buffered']
    #allocation5 [shape = 's32[1]{0}', space=sflag, size = 0x4, scoped, tag = 'scoped memory for tpu_custom_call.1']
    #allocation6 [shape = 's32[1]{0}', space=sflag, size = 0x4, scoped, tag = 'scoped memory for tpu_custom_call.1']
    #allocation7 [shape = 'u8[2048]{0}', space=vmem, size = 0x800, scoped, tag = 'input window, operand 2, single buffered']
    #allocation8 [shape = 's32[1]{0}', space=sflag, size = 0x4, scoped, tag = 'scoped memory for tpu_custom_call.1']
    #allocation9 [shape = 'u8[4096]{0}', space=vmem, size = 0x1000, scoped, tag = 'output window, operand 0, single buffered']
    %10 = vsyncpa [#allocation5], 0
    %11 = vsyncpa [#allocation8], 0
    %12 = vsyncpa [#allocation6], 0
    // Predicated region
    $region2: #{tpu_custom_call.1} parent=1 // pred_check
      _
    $region3: #{tpu_custom_call.1} parent=1 // pred_check_branch
      %14 = sbr.rel (0) target = $region5
    $region4: #{tpu_custom_call.1} parent=1 // pred_region
      %16 = vsyncadd [#allocation5], 0
      %s18 = sshll.u32 %s1, 4
      %s19 = int_to_ptr.hbm [resolvable:$true] %s18
      %s20 = sshll.u32 [#allocation4], 4
      %s21 = int_to_ptr.vmem [resolvable:$true] %s20
      %23 = dma.hbm_to_vmem [thread:$0]  %s19, 128, %s21, [#allocation5]
    $region5: #{tpu_custom_call.1} parent=1 // pred_fallthru
      _
    // Predicated region
    $region6: #{tpu_custom_call.1} parent=1 // pred_check
      _
    $region7: #{tpu_custom_call.1} parent=1 // pred_check_branch
      %25 = sbr.rel (0) target = $region9
    $region8: #{tpu_custom_call.1} parent=1 // pred_region
      %27 = vsyncadd [#allocation8], 0
      %s29 = sshll.u32 %s2, 4
      %s30 = int_to_ptr.hbm [resolvable:$true] %s29
      %s31 = sshll.u32 [#allocation7], 4
      %s32 = int_to_ptr.vmem [resolvable:$true] %s31
      %34 = dma.hbm_to_vmem [thread:$0]  %s30, 64, %s32, [#allocation8]
    $region9: #{tpu_custom_call.1} parent=1 // pred_fallthru
      _
    // Predicated region
    $region10: #{tpu_custom_call.1} parent=1 // pred_check
      _
    $region11: #{tpu_custom_call.1} parent=1 // pred_check_branch
      %36 = sbr.rel (0) target = $region13
    $region12: #{tpu_custom_call.1} parent=1 // pred_region
      _
    $region13: #{tpu_custom_call.1} parent=1 // pred_fallthru
      _
    // Predicated region
    $region14: #{tpu_custom_call.1} parent=1 // pred_check
      _
    $region15: #{tpu_custom_call.1} parent=1 // pred_check_branch
      %38 = sbr.rel (0) target = $region17
    $region16: #{tpu_custom_call.1} parent=1 // pred_region
      %40 = dma.done [#allocation5], 128
    $region17: #{tpu_custom_call.1} parent=1 // pred_fallthru
      _
    // Predicated region
    $region18: #{tpu_custom_call.1} parent=1 // pred_check
      _
    $region19: #{tpu_custom_call.1} parent=1 // pred_check_branch
      %42 = sbr.rel (0) target = $region21
    $region20: #{tpu_custom_call.1} parent=1 // pred_region
      %44 = dma.done [#allocation8], 64
    $region21: #{tpu_custom_call.1} parent=1 // pred_fallthru
      _
    %v46 = vld [vmem:[#allocation4] sm:$0xff]
    %v47 = vpack.c.bf16 %v46, %v46
    %v48 = vld [vmem:[#allocation7] sm:$0xf]
    %v49 = vld [vmem:[%s3] sm:$0x1]
    %v51 = vperm.slane %v49, 0
    %vm53 = vcmask 64512
    %v55 = vsel %vm53, %v47, 0
    %vm57 = vcmask 1043456
    %v59 = vsel %vm57, %v48, 0
    %61 = vmatpush.bf16.msra.mxu0 0
    %62 = vmatpush.bf16.msra.mxu0 0
    %63 = vmatpush.bf16.msra.mxu0 0
    %64 = vmatpush.bf16.msra.mxu0 0
    %65 = vmatpush.bf16.msra.mxu0 0
    %66 = vmatpush.bf16.msra.mxu0 0
    %67 = vmatpush.bf16.msra.mxu0 0
    %68 = vmatpush.bf16.msra.mxu0 %v59
    %69 = vmatmul.bf16.gmra.mxu0 %v55
    %v70 = vpop.f32.mrf.mxu0
    %v71 = vadd.f32 %v51, %v70
    %v72 = vpop.f32.mrf.mxu0
    %73 = vdwg.mxu0
    %vm74 = vcmask 261120
    %75 = vst.msk [vmem:[#allocation9] sm:$0xff] %vm74, %v71
    // Predicated region
    $region22: #{tpu_custom_call.1} parent=1 // pred_check
      _
    $region23: #{tpu_custom_call.1} parent=1 // pred_check_branch
      %77 = sbr.rel (0) target = $region25
    $region24: #{tpu_custom_call.1} parent=1 // pred_region
      %79 = vsyncadd [#allocation6], 0
      %s81 = sshll.u32 [#allocation9], 4
      %s82 = int_to_ptr.vmem [resolvable:$true] %s81
      %s83 = sshll.u32 %s4, 4
      %s84 = int_to_ptr.hbm [resolvable:$true] %s83
      %86 = dma.vmem_to_hbm [thread:$0]  %s82, 128, %s84, [#allocation6]
    $region25: #{tpu_custom_call.1} parent=1 // pred_fallthru
      _
    // Predicated region
    $region26: #{tpu_custom_call.1} parent=1 // pred_check
      _
    $region27: #{tpu_custom_call.1} parent=1 // pred_check_branch
      %88 = sbr.rel (0) target = $region29
    $region28: #{tpu_custom_call.1} parent=1 // pred_region
      %90 = dma.done [#allocation6], 128
    $region29: #{tpu_custom_call.1} parent=1 // pred_fallthru
      _
    %91 = vsyncpa [#allocation5], 1
    %92 = vsyncpa [#allocation8], 1
    %93 = vsyncpa [#allocation6], 1

</llo_original>
